<compile_context>
chip_gen: v7x
topology: tpu7x:2x2x1
jax: 0.10.0
libtpu: 0.0.40
codegen_flags: <defaults>
</compile_context>

<pallas_src>
import functools
import math

import jax
import jax.numpy as jnp
from jax import lax
from jax.experimental import pallas as pl
from jax.experimental.pallas import tpu as pltpu


# ----------------------------------------------------------------------------
# Kernel 1: packed complex Q/K/V projection over flattened (B*S, 2Dp) rows
# ----------------------------------------------------------------------------
def qkv_proj_kernel(x_ref, w_ref, b_ref, q_ref, k_ref, v_ref):
    """
    x_ref : (tm, 2Dp) f32   packed [real | imag] activation rows
    w_ref : (2Dp, 6Dp) bf16 packed complex Q|K|V weights (1/sqrt(D) folded into Q)
    b_ref : (1, 6Dp) f32    packed complex Q|K|V biases
    q/k/v : (tm, 2Dp) bf16  packed projections
    """
    f32, bf16 = jnp.float32, jnp.bfloat16
    x = x_ref[...].astype(bf16)
    qkv = jnp.dot(x, w_ref[...], preferred_element_type=f32) + b_ref[...]
    d2 = x.shape[-1]
    q_ref[...] = qkv[:, :d2].astype(bf16)
    k_ref[...] = qkv[:, d2:2 * d2].astype(bf16)
    v_ref[...] = qkv[:, 2 * d2:].astype(bf16)


# ----------------------------------------------------------------------------
# Kernel 2: flash-style complex attention + output projection + residual
#           + fused InstanceL2Norm (one image x batch instance per q-tile)
# ----------------------------------------------------------------------------
def flash_attn_norm_kernel(x_ref, q_ref, k_ref, v_ref, wo_ref, bo_ref, o_ref,
                           m_sc, l_sc, acc_sc, *, d_real, hw, norm_scale, eps):
    """
    x_ref : (1, hw, 2Dp) f32   residual input rows of this image/batch instance
    q_ref : (1, hw, 2Dp) bf16  packed Q (score scale pre-folded)
    k_ref : (1, tk, 2Dp) bf16  packed K tile
    v_ref : (1, tk, 2Dp) bf16  packed V tile
    wo_ref: (2Dp, 2Dp) bf16    packed complex output-projection weight
    bo_ref: (1, 2Dp) f32       packed complex output-projection bias
    o_ref : (1, hw, 2Dp) f32   attention + residual + fused InstanceL2Norm
    """
    f32, bf16 = jnp.float32, jnp.bfloat16
    ki = pl.program_id(2)

    @pl.when(ki == 0)
    def _init():
        m_sc[...] = jnp.full(m_sc.shape, -jnp.inf, f32)
        l_sc[...] = jnp.zeros(l_sc.shape, f32)
        acc_sc[...] = jnp.zeros(acc_sc.shape, f32)

    q = q_ref[0]                         # (hw, 2Dp) bf16
    k = k_ref[0]                         # (tk, 2Dp) bf16
    v = v_ref[0]                         # (tk, 2Dp) bf16

    # scores = Re(Q conj(K)^T) = qr@kr^T + qi@ki^T ; contracting the packed last
    # dims of both operands (per-KV-tile transpose handled by Mosaic, XLU slot idle).
    s = lax.dot_general(q, k, (((1,), (1,)), ((), ())),
                        preferred_element_type=f32)           # (hw, tk)

    # online softmax (f32)
    m_prev = m_sc[...]
    m_new = jnp.maximum(m_prev, jnp.max(s, axis=-1, keepdims=True))
    alpha = jnp.exp(m_prev - m_new)
    p = jnp.exp(s - m_new)
    l_sc[...] = alpha * l_sc[...] + jnp.sum(p, axis=-1, keepdims=True)
    acc_sc[...] = alpha * acc_sc[...] + jnp.dot(p.astype(bf16), v,
                                                preferred_element_type=f32)
    m_sc[...] = m_new

    @pl.when(ki == pl.num_programs(2) - 1)
    def _epilogue():
        d2 = acc_sc.shape[-1]
        dp = d2 // 2
        a = acc_sc[...] * pl.reciprocal(l_sc[...], approx=True)  # (hw, 2Dp)
        y = jnp.dot(a.astype(bf16), wo_ref[...],
                    preferred_element_type=f32) + bo_ref[...]
        y = y + x_ref[0]                                          # residual

        # Fused InstanceL2Norm over this (image, batch) instance;
        # real/imag halves normalised independently over d_real*hw elements.
        col = lax.broadcasted_iota(jnp.int32, (1, d2), 1)
        real_mask = col < dp
        sq = y * y
        ssq_total = jnp.sum(sq)
        ssq_r = jnp.sum(jnp.where(real_mask, sq, 0.0))
        ssq_i = ssq_total - ssq_r
        n_elem = float(d_real * hw)
        fr = norm_scale * lax.rsqrt((ssq_r + eps) / n_elem)
        fi = norm_scale * lax.rsqrt((ssq_i + eps) / n_elem)
        fac = jnp.where(real_mask, fr, fi)                        # (1, 2Dp)
        o_ref[0] = y * fac                 # single lane-dense full-block store


# ----------------------------------------------------------------------------
# Host-side packing helpers
# ----------------------------------------------------------------------------
def _pad2(w, pad):
    return jnp.pad(w, ((0, pad), (0, pad))) if pad else w


def _pad_cols(b, pad):
    return jnp.pad(b, ((0, 0), (0, pad))) if pad else b


def _pack_complex_weight(wr, wi):
    # [xr | xi] @ [[wr, wi], [-wi, wr]] = [xr@wr - xi@wi | xr@wi + xi@wr]
    top = jnp.concatenate([wr, wi], axis=1)
    bot = jnp.concatenate([-wi, wr], axis=1)
    return jnp.concatenate([top, bot], axis=0)          # (2Dp, 2Dp)


# ----------------------------------------------------------------------------
# Wrapper: ComTransformerEncoderLayer.forward
# ----------------------------------------------------------------------------
def com_transformer_encoder_layer(src_real, src_imag, input_shape, params):
    num_imgs, batch, dim, h, w = input_shape
    S, B, D = src_real.shape
    hw = h * w
    assert S == num_imgs * hw and B == batch and D == dim
    assert hw % 8 == 0, "h*w must be a multiple of 8 (sublane alignment)"

    # Pad d_model so that the packed real|imag width 2*Dp is a multiple of 128.
    Dp = max(64, ((D + 63) // 64) * 64)
    pad = Dp - D
    D2 = 2 * Dp

    # ---- host-side weight packing (bf16 for MXU, 1/sqrt(D) folded into Q) ----
    inv_sqrt_d = 1.0 / math.sqrt(D)
    wq = _pack_complex_weight(_pad2(params["wqr"], pad), _pad2(params["wqi"], pad)) * inv_sqrt_d
    wk = _pack_complex_weight(_pad2(params["wkr"], pad), _pad2(params["wki"], pad))
    wv = _pack_complex_weight(_pad2(params["wvr"], pad), _pad2(params["wvi"], pad))
    w_qkv = jnp.concatenate([wq, wk, wv], axis=1).astype(jnp.bfloat16)   # (2Dp, 6Dp)
    w_o = _pack_complex_weight(_pad2(params["wor"], pad),
                               _pad2(params["woi"], pad)).astype(jnp.bfloat16)

    bq = jnp.concatenate([_pad_cols(params["bqr"], pad),
                          _pad_cols(params["bqi"], pad)], axis=1) * inv_sqrt_d
    bk = jnp.concatenate([_pad_cols(params["bkr"], pad),
                          _pad_cols(params["bki"], pad)], axis=1)
    bv = jnp.concatenate([_pad_cols(params["bvr"], pad),
                          _pad_cols(params["bvi"], pad)], axis=1)
    b_qkv = jnp.concatenate([bq, bk, bv], axis=1).astype(jnp.float32)    # (1, 6Dp)
    b_o = jnp.concatenate([_pad_cols(params["bor"], pad),
                           _pad_cols(params["boi"], pad)],
                          axis=1).astype(jnp.float32)                    # (1, 2Dp)

    # ---- pack activations as [real | imag] (zero-padded), batch-major -------
    xr = jnp.pad(src_real, ((0, 0), (0, 0), (0, pad))) if pad else src_real
    xi = jnp.pad(src_imag, ((0, 0), (0, 0), (0, pad))) if pad else src_imag
    x = jnp.transpose(jnp.concatenate([xr, xi], axis=-1), (1, 0, 2))     # (B,S,2Dp)

    cparams = pltpu.CompilerParams(
        dimension_semantics=("parallel",),
        vmem_limit_bytes=48 * 1024 * 1024)

    # ---- kernel 1: fused Q|K|V projection over flattened rows ----------------
    BS = B * S
    tm = BS
    for cand in (512, 256, 128, 64, 32, 16, 8):
        if BS % cand == 0:
            tm = cand
            break
    x_flat = x.reshape(BS, D2)
    rowspec = pl.BlockSpec((tm, D2), lambda i: (i, 0))
    q_flat, k_flat, v_flat = pl.pallas_call(
        qkv_proj_kernel,
        out_shape=(jax.ShapeDtypeStruct((BS, D2), jnp.bfloat16),) * 3,
        grid=(BS // tm,),
        in_specs=[rowspec,
                  pl.BlockSpec((D2, 3 * D2), lambda i: (0, 0)),
                  pl.BlockSpec((1, 3 * D2), lambda i: (0, 0))],
        out_specs=(rowspec,) * 3,
        compiler_params=cparams,
    )(x_flat, w_qkv, b_qkv)

    q = q_flat.reshape(B, S, D2)
    k = k_flat.reshape(B, S, D2)
    v = v_flat.reshape(B, S, D2)

    # ---- kernel 2: flash attention + residual + fused InstanceL2Norm --------
    tk = hw                              # one image per KV tile
    num_kv = S // tk
    kernel = functools.partial(
        flash_attn_norm_kernel,
        d_real=D, hw=hw,
        norm_scale=math.sqrt(1.0 / (dim * 4 * 4)), eps=1e-5)

    qspec = pl.BlockSpec((1, hw, D2), lambda b, qi, ki: (b, qi, 0))
    kvspec = pl.BlockSpec((1, tk, D2), lambda b, qi, ki: (b, ki, 0))
    y = pl.pallas_call(
        kernel,
        out_shape=jax.ShapeDtypeStruct((B, S, D2), jnp.float32),
        grid=(B, num_imgs, num_kv),
        in_specs=[qspec,                                        # x (residual)
                  qspec,                                        # q
                  kvspec,                                       # k
                  kvspec,                                       # v
                  pl.BlockSpec((D2, D2), lambda b, qi, ki: (0, 0)),   # w_o
                  pl.BlockSpec((1, D2), lambda b, qi, ki: (0, 0))],   # b_o
        out_specs=qspec,
        scratch_shapes=[pltpu.VMEM((hw, 1), jnp.float32),       # m
                        pltpu.VMEM((hw, 1), jnp.float32),       # l
                        pltpu.VMEM((hw, D2), jnp.float32)],     # acc
        compiler_params=pltpu.CompilerParams(
            dimension_semantics=("parallel", "parallel", "arbitrary"),
            vmem_limit_bytes=48 * 1024 * 1024),
    )(x, q, k, v, w_o, b_o)

    # ---- back to the module's (S, B, D) seq-first layout ----------------------
    y = jnp.transpose(y, (1, 0, 2))                              # (S, B, 2Dp)
    return y[..., :D], y[..., Dp:Dp + D]


# ----------------------------------------------------------------------------
# Pure-JAX f32 reference (same canonical complex attention semantics)
# ----------------------------------------------------------------------------
def reference_forward(src_real, src_imag, input_shape, params):
    num_imgs, batch, dim, h, w = input_shape
    hw = h * w
    xr = jnp.transpose(src_real, (1, 0, 2))      # (B, S, D)
    xi = jnp.transpose(src_imag, (1, 0, 2))

    def clin(ar, ai, wr, wi, br, bi):
        return ar @ wr - ai @ wi + br, ar @ wi + ai @ wr + bi

    qr, qi = clin(xr, xi, params["wqr"], params["wqi"], params["bqr"], params["bqi"])
    kr, kk = clin(xr, xi, params["wkr"], params["wki"], params["bkr"], params["bki"])
    vr, vi = clin(xr, xi, params["wvr"], params["wvi"], params["bvr"], params["bvi"])
    inv = 1.0 / math.sqrt(dim)
    scores = (jnp.einsum("bqd,bkd->bqk", qr, kr)
              + jnp.einsum("bqd,bkd->bqk", qi, kk)) * inv
    attn = jax.nn.softmax(scores, axis=-1)
    ar = jnp.einsum("bqk,bkd->bqd", attn, vr)
    ai = jnp.einsum("bqk,bkd->bqd", attn, vi)
    outr, outi = clin(ar, ai, params["wor"], params["woi"], params["bor"], params["boi"])
    yr, yi = xr + outr, xi + outi

    def inorm(y):
        scale = math.sqrt(1.0 / (dim * 4 * 4))
        yb = y.reshape(y.shape[0], num_imgs, hw, dim)
        ssq = jnp.sum(yb * yb, axis=(2, 3), keepdims=True)
        fac = scale * jnp.sqrt((dim * hw) / (ssq + 1e-5))
        return (yb * fac).reshape(y.shape)

    yr, yi = inorm(yr), inorm(yi)
    return jnp.transpose(yr, (1, 0, 2)), jnp.transpose(yi, (1, 0, 2))


# ----------------------------------------------------------------------------
# Deterministic parameter init (complex linear layers of the attention)
# ----------------------------------------------------------------------------
def init_params(key, d_model):
    names = ["wqr", "wqi", "wkr", "wki", "wvr", "wvi", "wor", "woi"]
    keys = jax.random.split(key, len(names))
    params = {}
    std = 1.0 / math.sqrt(d_model)
    for n, k in zip(names, keys):
        params[n] = std * jax.random.normal(k, (d_model, d_model), jnp.float32)
    for n in ["bqr", "bqi", "bkr", "bki", "bvr", "bvi", "bor", "boi"]:
        params[n] = jnp.zeros((1, d_model), jnp.float32)
    return params


if __name__ == "__main__":
    num_imgs, batch, d_model, h, w = 2, 2, 32, 4, 4
    S = num_imgs * h * w
    input_shape = (num_imgs, batch, d_model, h, w)

    key = jax.random.PRNGKey(0)
    k1, k2 = jax.random.split(key)
    src_real = jax.random.normal(k1, (S, batch, d_model), jnp.float32)
    src_imag = jax.random.normal(k2, (S, batch, d_model), jnp.float32)

    params = init_params(jax.random.PRNGKey(42), d_model)

    out_real, out_imag = com_transformer_encoder_layer(
        src_real, src_imag, input_shape, params)
    jax.block_until_ready((out_real, out_imag))

    assert out_real.shape == (S, batch, d_model)
    assert out_imag.shape == (S, batch, d_model)
    assert bool(jnp.all(jnp.isfinite(out_real))) and bool(jnp.all(jnp.isfinite(out_imag)))

    # tolerance-asserted pure-JAX reference (bf16 MXU path + approx reciprocal)
    ref_real, ref_imag = reference_forward(src_real, src_imag, input_shape, params)
    max_ref = float(jnp.max(jnp.abs(jnp.stack([ref_real, ref_imag]))))
    max_err = float(jnp.max(jnp.abs(jnp.stack([out_real - ref_real,
                                               out_imag - ref_imag]))))
    assert max_err <= 0.08 * max_ref + 1e-4, (max_err, max_ref)

    print("KERNEL_OK")
</pallas_src>

<mosaic_0001>
module attributes {stable_mosaic.version = 11 : i64} {
  func.func @qkv_proj_kernel(%arg0: i32, %arg1: memref<64x128xf32, #tpu.memory_space<vmem>>, %arg2: memref<128x384xbf16, #tpu.memory_space<vmem>>, %arg3: memref<1x384xf32, #tpu.memory_space<vmem>>, %arg4: memref<64x128xbf16, #tpu.memory_space<vmem>>, %arg5: memref<64x128xbf16, #tpu.memory_space<vmem>>, %arg6: memref<64x128xbf16, #tpu.memory_space<vmem>>) attributes {dimension_semantics = [#tpu.dimension_semantics<parallel>], iteration_bounds = array<i64: 1>, scalar_prefetch = 0 : i64, scratch_operands = 0 : i64, tpu.core_type = #tpu.core_type<tc>, window_params = [{transform_indices = @transform_0, window_bounds = array<i64: 64, 128>}, {pipeline_mode = #tpu.pipeline_mode<synchronous>, transform_indices = @transform_1, window_bounds = array<i64: 128, 384>}, {pipeline_mode = #tpu.pipeline_mode<synchronous>, transform_indices = @transform_2, window_bounds = array<i64: 1, 384>}, {transform_indices = @transform_3, window_bounds = array<i64: 64, 128>}, {transform_indices = @transform_4, window_bounds = array<i64: 64, 128>}, {transform_indices = @transform_5, window_bounds = array<i64: 64, 128>}]} {
    %c0 = arith.constant 0 : index
    %c0_0 = arith.constant 0 : index
    %0 = vector.load %arg1[%c0, %c0_0] : memref<64x128xf32, #tpu.memory_space<vmem>>, vector<64x128xf32>
    %1 = arith.truncf %0 : vector<64x128xf32> to vector<64x128xbf16>
    %c0_1 = arith.constant 0 : index
    %c0_2 = arith.constant 0 : index
    %2 = vector.load %arg2[%c0_1, %c0_2] : memref<128x384xbf16, #tpu.memory_space<vmem>>, vector<128x384xbf16>
    %cst = arith.constant dense<0.000000e+00> : vector<64x384xf32>
    %3 = tpu.matmul %1, %2, %cst {dimension_numbers = #tpu.dot_dimension_numbers<[1], [0], [0], [1], [0, 0, 1, 1], [], []>} : vector<64x128xbf16>, vector<128x384xbf16>, vector<64x384xf32> -> vector<64x384xf32>
    %c0_3 = arith.constant 0 : index
    %c0_4 = arith.constant 0 : index
    %4 = vector.load %arg3[%c0_3, %c0_4] : memref<1x384xf32, #tpu.memory_space<vmem>>, vector<1x384xf32>
    %5 = vector.broadcast %4 : vector<1x384xf32> to vector<64x384xf32>
    %6 = arith.addf %3, %5 : vector<64x384xf32>
    %7 = vector.extract_strided_slice %6 {offsets = [0, 0], sizes = [64, 128], strides = [1, 1]} : vector<64x384xf32> to vector<64x128xf32>
    %8 = arith.truncf %7 : vector<64x128xf32> to vector<64x128xbf16>
    %c0_5 = arith.constant 0 : index
    %c0_6 = arith.constant 0 : index
    %9 = vector.load %arg4[%c0_5, %c0_6] : memref<64x128xbf16, #tpu.memory_space<vmem>>, vector<64x128xbf16>
    tpu.vector_store %arg4[%c0_5, %c0_6], %8 {strides = array<i32>} : memref<64x128xbf16, #tpu.memory_space<vmem>>, vector<64x128xbf16>,
    %10 = vector.extract_strided_slice %6 {offsets = [0, 128], sizes = [64, 128], strides = [1, 1]} : vector<64x384xf32> to vector<64x128xf32>
    %11 = arith.truncf %10 : vector<64x128xf32> to vector<64x128xbf16>
    %c0_7 = arith.constant 0 : index
    %c0_8 = arith.constant 0 : index
    %12 = vector.load %arg5[%c0_7, %c0_8] : memref<64x128xbf16, #tpu.memory_space<vmem>>, vector<64x128xbf16>
    tpu.vector_store %arg5[%c0_7, %c0_8], %11 {strides = array<i32>} : memref<64x128xbf16, #tpu.memory_space<vmem>>, vector<64x128xbf16>,
    %13 = vector.extract_strided_slice %6 {offsets = [0, 256], sizes = [64, 128], strides = [1, 1]} : vector<64x384xf32> to vector<64x128xf32>
    %14 = arith.truncf %13 : vector<64x128xf32> to vector<64x128xbf16>
    %c0_9 = arith.constant 0 : index
    %c0_10 = arith.constant 0 : index
    %15 = vector.load %arg6[%c0_9, %c0_10] : memref<64x128xbf16, #tpu.memory_space<vmem>>, vector<64x128xbf16>
    tpu.vector_store %arg6[%c0_9, %c0_10], %14 {strides = array<i32>} : memref<64x128xbf16, #tpu.memory_space<vmem>>, vector<64x128xbf16>,
    return
  }
  func.func @transform_0(%arg0: i32) -> (i32, i32) {
    %c0_i32 = arith.constant 0 : i32
    %c0_i32_0 = arith.constant 0 : i32
    return %arg0, %c0_i32 : i32, i32
  }
  func.func @transform_1(%arg0: i32) -> (i32, i32) {
    %c0_i32 = arith.constant 0 : i32
    %c0_i32_0 = arith.constant 0 : i32
    %c0_i32_1 = arith.constant 0 : i32
    return %c0_i32, %c0_i32_0 : i32, i32
  }
  func.func @transform_2(%arg0: i32) -> (i32, i32) {
    %c0_i32 = arith.constant 0 : i32
    %c0_i32_0 = arith.constant 0 : i32
    %c0_i32_1 = arith.constant 0 : i32
    return %c0_i32, %c0_i32_0 : i32, i32
  }
  func.func @transform_3(%arg0: i32) -> (i32, i32) {
    %c0_i32 = arith.constant 0 : i32
    %c0_i32_0 = arith.constant 0 : i32
    return %arg0, %c0_i32 : i32, i32
  }
  func.func @transform_4(%arg0: i32) -> (i32, i32) {
    %c0_i32 = arith.constant 0 : i32
    %c0_i32_0 = arith.constant 0 : i32
    return %arg0, %c0_i32 : i32, i32
  }
  func.func @transform_5(%arg0: i32) -> (i32, i32) {
    %c0_i32 = arith.constant 0 : i32
    %c0_i32_0 = arith.constant 0 : i32
    return %arg0, %c0_i32 : i32, i32
  }
}

</mosaic_0001>

<llo_original>
// kernel: tpu_custom_call.1
$region0: #{tpu_custom_call.1}
  #allocation0 [shape = 'u32[]', space=smem, size = 0x4, offset = 0x4, fixed_abs, tag = 'smem constant byte address 0x4 - core index']
  #allocation1 [shape = 'u32[144,128]{1,0:T(1,128)}', space=vmem, size = 0x12000, scoped, tag = 'internal scratch']
  %s0 = inlined_call_operand.hbm [shape: f32[64,128], index: 0, kind: input, shape index: {}]
  %s1 = inlined_call_operand.hbm [shape: bf16[128,384], index: 1, kind: input, shape index: {}]
  %s2 = inlined_call_operand.vmem [shape: f32[1,384], index: 2, kind: input, shape index: {}]
  %s3 = inlined_call_operand.hbm [shape: bf16[64,128], index: 3, kind: output, shape index: {0}]
  %s4 = inlined_call_operand.hbm [shape: bf16[64,128], index: 4, kind: output, shape index: {1}]
  %s5 = inlined_call_operand.hbm [shape: bf16[64,128], index: 5, kind: output, shape index: {2}]
  %6 = xla_tuple %s3, %s4, %s5
  %s7 = sld [smem:[#allocation0]]
  $region46: #{tpu_custom_call.1} parent=0
    _
  %s9 = ssub.s32 1, %s7
  %s10 = scalar_select 0, %s9, %s7
  $region1: #{tpu_custom_call.1} parent=0
    #allocation2 [shape = 'u8[32768]{0}', space=vmem, size = 0x8000, scoped, tag = 'input window, operand 0, single buffered']
    #allocation3 [shape = 's32[1]{0}', space=sflag, size = 0x4, scoped, tag = 'scoped memory for tpu_custom_call.1']
    #allocation4 [shape = 's32[1]{0}', space=sflag, size = 0x4, scoped, tag = 'scoped memory for tpu_custom_call.1']
    #allocation5 [shape = 'u8[98304]{0}', space=vmem, size = 0x18000, scoped, tag = 'input window, operand 1, single buffered']
    #allocation6 [shape = 's32[1]{0}', space=sflag, size = 0x4, scoped, tag = 'scoped memory for tpu_custom_call.1']
    #allocation7 [shape = 'u8[16384]{0}', space=vmem, size = 0x4000, scoped, tag = 'output window, operand 0, single buffered']
    #allocation8 [shape = 'u8[16384]{0}', space=vmem, size = 0x4000, scoped, tag = 'output window, operand 1, single buffered']
    #allocation9 [shape = 's32[1]{0}', space=sflag, size = 0x4, scoped, tag = 'scoped memory for tpu_custom_call.1']
    #allocation10 [shape = 'u8[16384]{0}', space=vmem, size = 0x4000, scoped, tag = 'output window, operand 2, single buffered']
    %11 = vsyncpa [#allocation3], 0
    %12 = vsyncpa [#allocation6], 0
    %13 = vsyncpa [#allocation4], 0
    %14 = vsyncpa [#allocation9], 0
    // Predicated region
    $region2: #{tpu_custom_call.1} parent=1 // pred_check
      _
    $region3: #{tpu_custom_call.1} parent=1 // pred_check_branch
      %16 = sbr.rel (0) target = $region5
    $region4: #{tpu_custom_call.1} parent=1 // pred_region
      %s18 = ssub.s32 1024, 1024
      %19 = vsyncadd [#allocation3], %s18
      %s20 = sshll.u32 [#allocation2], 4
      %s21 = int_to_ptr.vmem [resolvable:$true] %s20
      %26 = dma.hbm_to_vmem [thread:$0]  %s0, 1024, %s21, [#allocation3], 128, 128, 8
    $region5: #{tpu_custom_call.1} parent=1 // pred_fallthru
      _
    // Predicated region
    $region6: #{tpu_custom_call.1} parent=1 // pred_check
      _
    $region7: #{tpu_custom_call.1} parent=1 // pred_check_branch
      %28 = sbr.rel (0) target = $region9
    $region8: #{tpu_custom_call.1} parent=1 // pred_region
      %s30 = ssub.s32 3072, 3072
      %31 = vsyncadd [#allocation6], %s30
      %s32 = sshll.u32 [#allocation5], 4
      %s33 = int_to_ptr.vmem [resolvable:$true] %s32
      %38 = dma.hbm_to_vmem [thread:$0]  %s1, 3072, %s33, [#allocation6], 192, 192, 12
    $region9: #{tpu_custom_call.1} parent=1 // pred_fallthru
      _
    // Predicated region
    $region10: #{tpu_custom_call.1} parent=1 // pred_check
      _
    $region11: #{tpu_custom_call.1} parent=1 // pred_check_branch
      %40 = sbr.rel (0) target = $region13
    $region12: #{tpu_custom_call.1} parent=1 // pred_region
      _
    $region13: #{tpu_custom_call.1} parent=1 // pred_fallthru
      _
    // Predicated region
    $region14: #{tpu_custom_call.1} parent=1 // pred_check
      _
    $region15: #{tpu_custom_call.1} parent=1 // pred_check_branch
      %42 = sbr.rel (0) target = $region17
    $region16: #{tpu_custom_call.1} parent=1 // pred_region
      %43 = dma.done [#allocation3], 1024
    $region17: #{tpu_custom_call.1} parent=1 // pred_fallthru
      _
    // Predicated region
    $region18: #{tpu_custom_call.1} parent=1 // pred_check
      _
    $region19: #{tpu_custom_call.1} parent=1 // pred_check_branch
      %45 = sbr.rel (0) target = $region21
    $region20: #{tpu_custom_call.1} parent=1 // pred_region
      %46 = dma.done [#allocation6], 3072
    $region21: #{tpu_custom_call.1} parent=1 // pred_fallthru
      _
    %v48 = vld [vmem:[#allocation2] sm:$0xff]
    %v49 = vld [vmem:[#allocation2 + $0x8] sm:$0xff]
    %v50 = vld [vmem:[#allocation2 + $0x10] sm:$0xff]
    %v51 = vld [vmem:[#allocation2 + $0x18] sm:$0xff]
    %v52 = vld [vmem:[#allocation2 + $0x20] sm:$0xff]
    %v53 = vld [vmem:[#allocation2 + $0x28] sm:$0xff]
    %v54 = vld [vmem:[#allocation2 + $0x30] sm:$0xff]
    %v55 = vld [vmem:[#allocation2 + $0x38] sm:$0xff]
    %v56 = vpack.c.bf16 %v49, %v48
    %v57 = vpack.c.bf16 %v51, %v50
    %v58 = vpack.c.bf16 %v53, %v52
    %v59 = vpack.c.bf16 %v55, %v54
    %v60 = vld [vmem:[#allocation5] sm:$0xff]
    %v61 = vld [vmem:[#allocation5 + $0x8] sm:$0xf]
    %v62 = vld [vmem:[#allocation5 + $0xc] sm:$0xff]
    %v63 = vld [vmem:[#allocation5 + $0x14] sm:$0xf]
    %v64 = vld [vmem:[#allocation5 + $0x18] sm:$0xff]
    %v65 = vld [vmem:[#allocation5 + $0x20] sm:$0xf]
    %v66 = vld [vmem:[#allocation5 + $0x24] sm:$0xff]
    %v67 = vld [vmem:[#allocation5 + $0x2c] sm:$0xf]
    %v68 = vld [vmem:[#allocation5 + $0x30] sm:$0xff]
    %v69 = vld [vmem:[#allocation5 + $0x38] sm:$0xf]
    %v70 = vld [vmem:[#allocation5 + $0x3c] sm:$0xff]
    %v71 = vld [vmem:[#allocation5 + $0x44] sm:$0xf]
    %v72 = vld [vmem:[#allocation5 + $0x48] sm:$0xff]
    %v73 = vld [vmem:[#allocation5 + $0x50] sm:$0xf]
    %v74 = vld [vmem:[#allocation5 + $0x54] sm:$0xff]
    %v75 = vld [vmem:[#allocation5 + $0x5c] sm:$0xf]
    %v76 = vld [vmem:[#allocation5 + $0x60] sm:$0xff]
    %v77 = vld [vmem:[#allocation5 + $0x68] sm:$0xf]
    %v78 = vld [vmem:[#allocation5 + $0x6c] sm:$0xff]
    %v79 = vld [vmem:[#allocation5 + $0x74] sm:$0xf]
    %v80 = vld [vmem:[#allocation5 + $0x78] sm:$0xff]
    %v81 = vld [vmem:[#allocation5 + $0x80] sm:$0xf]
    %v82 = vld [vmem:[#allocation5 + $0x84] sm:$0xff]
    %v83 = vld [vmem:[#allocation5 + $0x8c] sm:$0xf]
    %v84 = vld [vmem:[#allocation5 + $0x90] sm:$0xff]
    %v85 = vld [vmem:[#allocation5 + $0x98] sm:$0xf]
    %v86 = vld [vmem:[#allocation5 + $0x9c] sm:$0xff]
    %v87 = vld [vmem:[#allocation5 + $0xa4] sm:$0xf]
    %v88 = vld [vmem:[#allocation5 + $0xa8] sm:$0xff]
    %v89 = vld [vmem:[#allocation5 + $0xb0] sm:$0xf]
    %v90 = vld [vmem:[#allocation5 + $0xb4] sm:$0xff]
    %v91 = vld [vmem:[#allocation5 + $0xbc] sm:$0xf]
    %v92 = vld [vmem:[%s2] sm:$0x7]
    %v94 = vlaneseq
    %v95 = vshrl.u32 %v94, 7
    %v96 = vsub.s32 0, %v95
    %v97 = vrot.slane %v92, %v96
    %v98 = vlaneseq
    %v99 = vshrl.u32 %v98, 7
    %v100 = vsub.s32 1, %v99
    %v101 = vrot.slane %v92, %v100
    %v102 = vlaneseq
    %v103 = vshrl.u32 %v102, 7
    %v104 = vsub.s32 2, %v103
    %v105 = vrot.slane %v92, %v104
    %v141 = vunpack.c.l.b16 %v60
    %v142 = vunpack.c.h.b16 %v60
    %v143 = vunpack.c.l.b16 %v61
    %v144 = vunpack.c.l.b16 %v62
    %v145 = vunpack.c.h.b16 %v62
    %v146 = vunpack.c.l.b16 %v63
    %v147 = vunpack.c.l.b16 %v64
    %v148 = vunpack.c.h.b16 %v64
    %v149 = vunpack.c.l.b16 %v65
    %v150 = vunpack.c.l.b16 %v66
    %v151 = vunpack.c.h.b16 %v66
    %v152 = vunpack.c.l.b16 %v67
    %v153 = vunpack.c.l.b16 %v68
    %v154 = vunpack.c.h.b16 %v68
    %v155 = vunpack.c.l.b16 %v69
    %v156 = vunpack.c.l.b16 %v70
    %v157 = vunpack.c.h.b16 %v70
    %v158 = vunpack.c.l.b16 %v71
    %v159 = vunpack.c.l.b16 %v72
    %v160 = vunpack.c.h.b16 %v72
    %v161 = vunpack.c.l.b16 %v73
    %v162 = vunpack.c.l.b16 %v74
    %v163 = vunpack.c.h.b16 %v74
    %v164 = vunpack.c.l.b16 %v75
    %v165 = vunpack.c.l.b16 %v76
    %v166 = vunpack.c.h.b16 %v76
    %v167 = vunpack.c.l.b16 %v77
    %v168 = vunpack.c.l.b16 %v78
    %v169 = vunpack.c.h.b16 %v78
    %v170 = vunpack.c.l.b16 %v79
    %v171 = vunpack.c.l.b16 %v80
    %v172 = vunpack.c.h.b16 %v80
    %v173 = vunpack.c.l.b16 %v81
    %v174 = vunpack.c.l.b16 %v82
    %v175 = vunpack.c.h.b16 %v82
    %v176 = vunpack.c.l.b16 %v83
    %v177 = vunpack.c.l.b16 %v84
    %v178 = vunpack.c.h.b16 %v84
    %v179 = vunpack.c.l.b16 %v85
    %v180 = vunpack.c.l.b16 %v86
    %v181 = vunpack.c.h.b16 %v86
    %v182 = vunpack.c.l.b16 %v87
    %v183 = vunpack.c.l.b16 %v88
    %v184 = vunpack.c.h.b16 %v88
    %v185 = vunpack.c.l.b16 %v89
    %v186 = vunpack.c.l.b16 %v90
    %v187 = vunpack.c.h.b16 %v90
    %v188 = vunpack.c.l.b16 %v91
    %v189 = vpack.c.b16 %v144, %v141
    %v190 = vpack.c.b16 %v145, %v142
    %v191 = vpack.c.b16 %v146, %v143
    %v192 = vpack.c.b16 %v150, %v147
    %v193 = vpack.c.b16 %v151, %v148
    %v194 = vpack.c.b16 %v152, %v149
    %v195 = vpack.c.b16 %v156, %v153
    %v196 = vpack.c.b16 %v157, %v154
    %v197 = vpack.c.b16 %v158, %v155
    %v198 = vpack.c.b16 %v162, %v159
    %v199 = vpack.c.b16 %v163, %v160
    %v200 = vpack.c.b16 %v164, %v161
    %v201 = vpack.c.b16 %v168, %v165
    %v202 = vpack.c.b16 %v169, %v166
    %v203 = vpack.c.b16 %v170, %v167
    %v204 = vpack.c.b16 %v174, %v171
    %v205 = vpack.c.b16 %v175, %v172
    %v206 = vpack.c.b16 %v176, %v173
    %v207 = vpack.c.b16 %v180, %v177
    %v208 = vpack.c.b16 %v181, %v178
    %v209 = vpack.c.b16 %v182, %v179
    %v210 = vpack.c.b16 %v186, %v183
    %v211 = vpack.c.b16 %v187, %v184
    %v212 = vpack.c.b16 %v188, %v185
    %237 = vmatprep.subr.bf16.mxu0 %v190
    %238 = vmatpush1.bf16.msra.mxu0 %v189
    %239 = vmatprep.subr.bf16.mxu0 %v193
    %240 = vmatpush1.bf16.msra.mxu0 %v192
    %241 = vmatprep.subr.bf16.mxu0 %v196
    %242 = vmatpush1.bf16.msra.mxu0 %v195
    %243 = vmatprep.subr.bf16.mxu0 %v199
    %244 = vmatpush1.bf16.msra.mxu0 %v198
    %245 = vmatprep.subr.bf16.mxu0 %v202
    %246 = vmatpush1.bf16.msra.mxu0 %v201
    %247 = vmatprep.subr.bf16.mxu0 %v205
    %248 = vmatpush1.bf16.msra.mxu0 %v204
    %249 = vmatprep.subr.bf16.mxu0 %v208
    %250 = vmatpush1.bf16.msra.mxu0 %v207
    %251 = vmatprep.subr.bf16.mxu0 %v211
    %252 = vmatpush1.bf16.msra.mxu0 %v210
    %253 = vmatprep.subr.bf16.mxu0 0
    %254 = vmatpush1.bf16.msra.mxu0 0
    %255 = vmatprep.subr.bf16.mxu0 0
    %256 = vmatpush1.bf16.msra.mxu0 0
    %257 = vmatprep.subr.bf16.mxu0 0
    %258 = vmatpush1.bf16.msra.mxu0 0
    %259 = vmatprep.subr.bf16.mxu0 0
    %260 = vmatpush1.bf16.msra.mxu0 0
    %261 = vmatprep.subr.bf16.mxu0 0
    %262 = vmatpush1.bf16.msra.mxu0 0
    %263 = vmatprep.subr.bf16.mxu0 0
    %264 = vmatpush1.bf16.msra.mxu0 0
    %265 = vmatprep.subr.bf16.mxu0 0
    %266 = vmatpush1.bf16.msra.mxu0 0
    %267 = vmatprep.subr.bf16.mxu0 0
    %268 = vmatpush1.bf16.msra.mxu0 0
    %269 = vmatprep.mubr.bf16.mxu0 0
    %270 = vmatmul.mubr.bf16.gmra.mrb[0].mxu0 %v56
    %v271 = vpop.f32.mrb[0].mxu0
    %v272 = vadd.f32 %v97, %v271
    %v273 = vpop.f32.mrb[0].mxu0
    %v274 = vadd.f32 %v101, %v273
    %v275 = vpop.f32.mrb[0].mxu0
    %v276 = vadd.f32 %v97, %v275
    %v277 = vpop.f32.mrb[0].mxu0
    %v278 = vadd.f32 %v101, %v277
    %279 = vmatprep.mubr.bf16.mxu0 0
    %280 = vmatmul.mubr.bf16.gmra.mrb[0].mxu0 %v57
    %v281 = vpop.f32.mrb[0].mxu0
    %v282 = vadd.f32 %v97, %v281
    %v283 = vpop.f32.mrb[0].mxu0
    %v284 = vadd.f32 %v101, %v283
    %v285 = vpop.f32.mrb[0].mxu0
    %v286 = vadd.f32 %v97, %v285
    %v287 = vpop.f32.mrb[0].mxu0
    %v288 = vadd.f32 %v101, %v287
    %289 = vmatprep.mubr.bf16.mxu0 0
    %290 = vmatmul.mubr.bf16.gmra.mrb[0].mxu0 %v58
    %v291 = vpop.f32.mrb[0].mxu0
    %v292 = vadd.f32 %v97, %v291
    %v293 = vpop.f32.mrb[0].mxu0
    %v294 = vadd.f32 %v101, %v293
    %v295 = vpop.f32.mrb[0].mxu0
    %v296 = vadd.f32 %v97, %v295
    %v297 = vpop.f32.mrb[0].mxu0
    %v298 = vadd.f32 %v101, %v297
    %299 = vmatprep.mubr.bf16.mxu0 0
    %300 = vmatmul.mubr.bf16.gmra.mrb[0].mxu0 %v59
    %v301 = vpop.f32.mrb[0].mxu0
    %v302 = vadd.f32 %v97, %v301
    %v303 = vpop.f32.mrb[0].mxu0
    %v304 = vadd.f32 %v101, %v303
    %v305 = vpop.f32.mrb[0].mxu0
    %v306 = vadd.f32 %v97, %v305
    %v307 = vpop.f32.mrb[0].mxu0
    %v308 = vadd.f32 %v101, %v307
    %309 = vdwg.mxu0
    %310 = vmatprep.subr.bf16.mxu0 0
    %311 = vmatpush1.bf16.msra.mxu0 %v191
    %312 = vmatprep.subr.bf16.mxu0 0
    %313 = vmatpush1.bf16.msra.mxu0 %v194
    %314 = vmatprep.subr.bf16.mxu0 0
    %315 = vmatpush1.bf16.msra.mxu0 %v197
    %316 = vmatprep.subr.bf16.mxu0 0
    %317 = vmatpush1.bf16.msra.mxu0 %v200
    %318 = vmatprep.subr.bf16.mxu0 0
    %319 = vmatpush1.bf16.msra.mxu0 %v203
    %320 = vmatprep.subr.bf16.mxu0 0
    %321 = vmatpush1.bf16.msra.mxu0 %v206
    %322 = vmatprep.subr.bf16.mxu0 0
    %323 = vmatpush1.bf16.msra.mxu0 %v209
    %324 = vmatprep.subr.bf16.mxu0 0
    %325 = vmatpush1.bf16.msra.mxu0 %v212
    %326 = vmatprep.subr.bf16.mxu0 0
    %327 = vmatpush1.bf16.msra.mxu0 0
    %328 = vmatprep.subr.bf16.mxu0 0
    %329 = vmatpush1.bf16.msra.mxu0 0
    %330 = vmatprep.subr.bf16.mxu0 0
    %331 = vmatpush1.bf16.msra.mxu0 0
    %332 = vmatprep.subr.bf16.mxu0 0
    %333 = vmatpush1.bf16.msra.mxu0 0
    %334 = vmatprep.subr.bf16.mxu0 0
    %335 = vmatpush1.bf16.msra.mxu0 0
    %336 = vmatprep.subr.bf16.mxu0 0
    %337 = vmatpush1.bf16.msra.mxu0 0
    %338 = vmatprep.subr.bf16.mxu0 0
    %339 = vmatpush1.bf16.msra.mxu0 0
    %340 = vmatprep.subr.bf16.mxu0 0
    %341 = vmatpush1.bf16.msra.mxu0 0
    %342 = vmatprep.mubr.bf16.mxu0 0
    %343 = vmatmul.mubr.bf16.gmra.mrb[0].mxu0 %v56
    %v344 = vpop.f32.mrb[0].mxu0
    %v345 = vadd.f32 %v105, %v344
    %v346 = vpop.f32.mrb[0].mxu0
    %v347 = vpop.f32.mrb[0].mxu0
    %v348 = vadd.f32 %v105, %v347
    %v349 = vpop.f32.mrb[0].mxu0
    %350 = vmatprep.mubr.bf16.mxu0 0
    %351 = vmatmul.mubr.bf16.gmra.mrb[0].mxu0 %v57
    %v352 = vpop.f32.mrb[0].mxu0
    %v353 = vadd.f32 %v105, %v352
    %v354 = vpop.f32.mrb[0].mxu0
    %v355 = vpop.f32.mrb[0].mxu0
    %v356 = vadd.f32 %v105, %v355
    %v357 = vpop.f32.mrb[0].mxu0
    %358 = vmatprep.mubr.bf16.mxu0 0
    %359 = vmatmul.mubr.bf16.gmra.mrb[0].mxu0 %v58
    %v360 = vpop.f32.mrb[0].mxu0
    %v361 = vadd.f32 %v105, %v360
    %v362 = vpop.f32.mrb[0].mxu0
    %v363 = vpop.f32.mrb[0].mxu0
    %v364 = vadd.f32 %v105, %v363
    %v365 = vpop.f32.mrb[0].mxu0
    %366 = vmatprep.mubr.bf16.mxu0 0
    %367 = vmatmul.mubr.bf16.gmra.mrb[0].mxu0 %v59
    %v368 = vpop.f32.mrb[0].mxu0
    %v369 = vadd.f32 %v105, %v368
    %v370 = vpop.f32.mrb[0].mxu0
    %v371 = vpop.f32.mrb[0].mxu0
    %v372 = vadd.f32 %v105, %v371
    %v373 = vpop.f32.mrb[0].mxu0
    %374 = vdwg.mxu0
    %v375 = vpack.c.bf16 %v276, %v272
    %v376 = vpack.c.bf16 %v286, %v282
    %v377 = vpack.c.bf16 %v296, %v292
    %v378 = vpack.c.bf16 %v306, %v302
    %v383 = vunpack.c.l.b16 %v375
    %v384 = vunpack.c.h.b16 %v375
    %v385 = vunpack.c.l.b16 %v376
    %v386 = vunpack.c.h.b16 %v376
    %v387 = vunpack.c.l.b16 %v377
    %v388 = vunpack.c.h.b16 %v377
    %v389 = vunpack.c.l.b16 %v378
    %v390 = vunpack.c.h.b16 %v378
    %v391 = vpack.c.b16 %v383, %v383
    %v392 = vpack.c.b16 %v384, %v384
    %v393 = vpack.c.b16 %v385, %v385
    %v394 = vpack.c.b16 %v386, %v386
    %v395 = vpack.c.b16 %v387, %v387
    %v396 = vpack.c.b16 %v388, %v388
    %v397 = vpack.c.b16 %v389, %v389
    %v398 = vpack.c.b16 %v390, %v390
    %407 = vst [vmem:[#allocation7] sm:$0xf] %v391
    %408 = vst [vmem:[#allocation7 + $0x4] sm:$0xf] %v392
    %409 = vst [vmem:[#allocation7 + $0x8] sm:$0xf] %v393
    %410 = vst [vmem:[#allocation7 + $0xc] sm:$0xf] %v394
    %411 = vst [vmem:[#allocation7 + $0x10] sm:$0xf] %v395
    %412 = vst [vmem:[#allocation7 + $0x14] sm:$0xf] %v396
    %413 = vst [vmem:[#allocation7 + $0x18] sm:$0xf] %v397
    %414 = vst [vmem:[#allocation7 + $0x1c] sm:$0xf] %v398
    %v415 = vpack.c.bf16 %v278, %v274
    %v416 = vpack.c.bf16 %v288, %v284
    %v417 = vpack.c.bf16 %v298, %v294
    %v418 = vpack.c.bf16 %v308, %v304
    %v423 = vunpack.c.l.b16 %v415
    %v424 = vunpack.c.h.b16 %v415
    %v425 = vunpack.c.l.b16 %v416
    %v426 = vunpack.c.h.b16 %v416
    %v427 = vunpack.c.l.b16 %v417
    %v428 = vunpack.c.h.b16 %v417
    %v429 = vunpack.c.l.b16 %v418
    %v430 = vunpack.c.h.b16 %v418
    %v431 = vpack.c.b16 %v423, %v423
    %v432 = vpack.c.b16 %v424, %v424
    %v433 = vpack.c.b16 %v425, %v425
    %v434 = vpack.c.b16 %v426, %v426
    %v435 = vpack.c.b16 %v427, %v427
    %v436 = vpack.c.b16 %v428, %v428
    %v437 = vpack.c.b16 %v429, %v429
    %v438 = vpack.c.b16 %v430, %v430
    %447 = vst [vmem:[#allocation8] sm:$0xf] %v431
    %448 = vst [vmem:[#allocation8 + $0x4] sm:$0xf] %v432
    %449 = vst [vmem:[#allocation8 + $0x8] sm:$0xf] %v433
    %450 = vst [vmem:[#allocation8 + $0xc] sm:$0xf] %v434
    %451 = vst [vmem:[#allocation8 + $0x10] sm:$0xf] %v435
    %452 = vst [vmem:[#allocation8 + $0x14] sm:$0xf] %v436
    %453 = vst [vmem:[#allocation8 + $0x18] sm:$0xf] %v437
    %454 = vst [vmem:[#allocation8 + $0x1c] sm:$0xf] %v438
    %v455 = vpack.c.bf16 %v348, %v345
    %v456 = vpack.c.bf16 %v356, %v353
    %v457 = vpack.c.bf16 %v364, %v361
    %v458 = vpack.c.bf16 %v372, %v369
    %v463 = vunpack.c.l.b16 %v455
    %v464 = vunpack.c.h.b16 %v455
    %v465 = vunpack.c.l.b16 %v456
    %v466 = vunpack.c.h.b16 %v456
    %v467 = vunpack.c.l.b16 %v457
    %v468 = vunpack.c.h.b16 %v457
    %v469 = vunpack.c.l.b16 %v458
    %v470 = vunpack.c.h.b16 %v458
    %v471 = vpack.c.b16 %v463, %v463
    %v472 = vpack.c.b16 %v464, %v464
    %v473 = vpack.c.b16 %v465, %v465
    %v474 = vpack.c.b16 %v466, %v466
    %v475 = vpack.c.b16 %v467, %v467
    %v476 = vpack.c.b16 %v468, %v468
    %v477 = vpack.c.b16 %v469, %v469
    %v478 = vpack.c.b16 %v470, %v470
    %487 = vst [vmem:[#allocation10] sm:$0xf] %v471
    %488 = vst [vmem:[#allocation10 + $0x4] sm:$0xf] %v472
    %489 = vst [vmem:[#allocation10 + $0x8] sm:$0xf] %v473
    %490 = vst [vmem:[#allocation10 + $0xc] sm:$0xf] %v474
    %491 = vst [vmem:[#allocation10 + $0x10] sm:$0xf] %v475
    %492 = vst [vmem:[#allocation10 + $0x14] sm:$0xf] %v476
    %493 = vst [vmem:[#allocation10 + $0x18] sm:$0xf] %v477
    %494 = vst [vmem:[#allocation10 + $0x1c] sm:$0xf] %v478
    // Predicated region
    $region22: #{tpu_custom_call.1} parent=1 // pred_check
      _
    $region23: #{tpu_custom_call.1} parent=1 // pred_check_branch
      %496 = sbr.rel (0) target = $region25
    $region24: #{tpu_custom_call.1} parent=1 // pred_region
      %s498 = ssub.s32 512, 512
      %499 = vsyncadd [#allocation4], %s498
      %s500 = sshll.u32 [#allocation7], 4
      %s501 = int_to_ptr.vmem [resolvable:$true] %s500
      %506 = dma.vmem_to_hbm [thread:$0]  %s501, 512, %s3, [#allocation4], 64, 64, 4
    $region25: #{tpu_custom_call.1} parent=1 // pred_fallthru
      _
    // Predicated region
    $region26: #{tpu_custom_call.1} parent=1 // pred_check
      _
    $region27: #{tpu_custom_call.1} parent=1 // pred_check_branch
      %508 = sbr.rel (0) target = $region29
    $region28: #{tpu_custom_call.1} parent=1 // pred_region
      %s510 = ssub.s32 512, 512
      %511 = vsyncadd [#allocation9], %s510
      %s512 = sshll.u32 [#allocation8], 4
      %s513 = int_to_ptr.vmem [resolvable:$true] %s512
      %518 = dma.vmem_to_hbm [thread:$0]  %s513, 512, %s4, [#allocation9], 64, 64, 4
    $region29: #{tpu_custom_call.1} parent=1 // pred_fallthru
      _
    // Predicated region
    $region30: #{tpu_custom_call.1} parent=1 // pred_check
      _
    $region31: #{tpu_custom_call.1} parent=1 // pred_check_branch
      %520 = sbr.rel (0) target = $region33
    $region32: #{tpu_custom_call.1} parent=1 // pred_region
      %s522 = ssub.s32 512, 512
      %523 = vsyncadd [#allocation9], %s522
      %s524 = sshll.u32 [#allocation10], 4
      %s525 = int_to_ptr.vmem [resolvable:$true] %s524
      %530 = dma.vmem_to_hbm [thread:$0]  %s525, 512, %s5, [#allocation9], 64, 64, 4
    $region33: #{tpu_custom_call.1} parent=1 // pred_fallthru
      _
    // Predicated region
    $region34: #{tpu_custom_call.1} parent=1 // pred_check
      _
    $region35: #{tpu_custom_call.1} parent=1 // pred_check_branch
      %532 = sbr.rel (0) target = $region37
    $region36: #{tpu_custom_call.1} parent=1 // pred_region
      %533 = dma.done [#allocation4], 512
    $region37: #{tpu_custom_call.1} parent=1 // pred_fallthru
      _
    // Predicated region
    $region38: #{tpu_custom_call.1} parent=1 // pred_check
      _
    $region39: #{tpu_custom_call.1} parent=1 // pred_check_branch
      %535 = sbr.rel (0) target = $region41
    $region40: #{tpu_custom_call.1} parent=1 // pred_region
      %536 = dma.done [#allocation9], 512
    $region41: #{tpu_custom_call.1} parent=1 // pred_fallthru
      _
    // Predicated region
    $region42: #{tpu_custom_call.1} parent=1 // pred_check
      _
    $region43: #{tpu_custom_call.1} parent=1 // pred_check_branch
      %538 = sbr.rel (0) target = $region45
    $region44: #{tpu_custom_call.1} parent=1 // pred_region
      %539 = dma.done [#allocation9], 512
    $region45: #{tpu_custom_call.1} parent=1 // pred_fallthru
      _
    %540 = vsyncpa [#allocation3], 1
    %541 = vsyncpa [#allocation6], 1
    %542 = vsyncpa [#allocation4], 1
    %543 = vsyncpa [#allocation9], 1

</llo_original>
